<compile_context>
chip_gen: v7x
topology: tpu7x:2x2x1
jax: 0.10.0
libtpu: 0.0.40
codegen_flags: <defaults>
</compile_context>

<pallas_src>
import functools

import jax
import jax.numpy as jnp
from jax.experimental import pallas as pl
from jax.experimental.pallas import tpu as pltpu


def _adj_kernel(dim_p, block_rows, mu_ref, sigma_ref, dl_ref, dt_ref, a_ref, o_ref):
    """One full-width row tile of the output adjacency matrix.

    dl_ref: (block_rows, dim_p)  rows of D    feeding the bottom-left block (G)
    dt_ref: (block_rows, dim_l)  rows of D^T  feeding the top-right  block (G^T)
    a_ref / o_ref: (block_rows, dim_c) tile of A / A2 (aliased HBM buffers).
    """
    mu = mu_ref[0]
    inv_sigma = 1.0 / sigma_ref[0]          # exact scalar reciprocal (1e-6 tol)

    def gauss(d):
        return jnp.where(d > 0, jnp.exp(-(d - mu) ** 2) * inv_sigma,
                         0.0).astype(o_ref.dtype)

    g_bl = gauss(dl_ref[...])               # (block_rows, dim_p)
    g_tr = gauss(dt_ref[...])               # (block_rows, dim_l)

    dim_l = dt_ref.shape[1]
    r0 = pl.program_id(0) * block_rows
    row = jax.lax.broadcasted_iota(jnp.int32, (block_rows, 1), 0) + r0
    is_ligand_row = row >= dim_p            # bottom (ligand) rows of the output

    # Left columns [0, dim_p): ligand rows take G, protein rows keep A.
    o_ref[:, pl.ds(0, dim_p)] = jnp.where(
        is_ligand_row, g_bl, a_ref[:, pl.ds(0, dim_p)])
    # Right columns [dim_p, dim_c): protein rows take G^T, ligand rows keep A.
    o_ref[:, pl.ds(dim_p, dim_l)] = jnp.where(
        is_ligand_row, a_ref[:, pl.ds(dim_p, dim_l)], g_tr)


def _pick_block_rows(dim_c, itemsize, vmem_budget_bytes):
    """Row-tile height: as big as the VMEM budget allows, but never one tile."""
    if dim_c <= 8:
        return dim_c
    # Per grid step (everything double-buffered by the pipeline):
    #   A-in tile + out tile : 2 * 2 * br * dim_c * itemsize
    #   D block + D^T block  : 2 * br * (dim_p + dim_l) * itemsize = 2*br*dim_c
    # -> ~6 * br * dim_c * itemsize.
    vmem_cap = vmem_budget_bytes // (6 * dim_c * itemsize)
    # Keep >= ~8 grid steps so the DMA/compute pipeline has depth and both
    # v7x TensorCores get work (never collapse to a single-step grid).
    grid_cap = dim_c // 8
    br = min(vmem_cap, grid_cap)
    return max(8, (br // 8) * 8)


def distance_aware_adjacency(A, D, mu, sigma, *, vmem_budget_bytes=32 * 1024 * 1024):
    """A: (dim_c, dim_c), D: (dim_l, dim_p), mu/sigma: (1,) params (as in torch)."""
    dim_l, dim_p = D.shape
    dim_c = A.shape[0]
    assert A.shape == (dim_c, dim_c) and dim_c == dim_l + dim_p

    dtype = A.dtype
    itemsize = jnp.dtype(dtype).itemsize
    br = _pick_block_rows(dim_c, itemsize, vmem_budget_bytes)
    n_tiles = pl.cdiv(dim_c, br)
    r_extra = n_tiles * br - dim_c          # ragged-last-tile overhang

    # Small zero-padded copies of D / D^T (NOT a dim_c^2 "Dfull"):
    #  * Dl: D with (dim_p % br) zero rows on top and r_extra at the bottom, so
    #    the (br, dim_p) block feeding output rows [r0, r0+br) is block-aligned
    #    (block index i - dim_p//br) even when a row tile straddles dim_p.
    #  * Dt: D^T padded at the bottom to a multiple of br rows.
    pad_top = dim_p % br
    Dl = jnp.pad(D.astype(dtype), ((pad_top, r_extra), (0, 0)))
    Dt = jnp.pad(jnp.transpose(D).astype(dtype), ((0, (-dim_p) % br), (0, 0)))

    n_lead = dim_p // br                    # row tiles fully above the ligand block
    n_dt_blocks = Dt.shape[0] // br

    row_spec = pl.BlockSpec((br, dim_c), lambda i: (i, 0))
    dl_spec = pl.BlockSpec((br, dim_p), lambda i: (jnp.maximum(i - n_lead, 0), 0))
    dt_spec = pl.BlockSpec((br, dim_l), lambda i: (jnp.minimum(i, n_dt_blocks - 1), 0))
    smem = pl.BlockSpec(memory_space=pltpu.MemorySpace.SMEM)

    kernel = functools.partial(_adj_kernel, dim_p, br)

    return pl.pallas_call(
        kernel,
        out_shape=jax.ShapeDtypeStruct((dim_c, dim_c), dtype),
        grid=(n_tiles,),
        in_specs=[smem, smem, dl_spec, dt_spec, row_spec],
        out_specs=row_spec,
        input_output_aliases={4: 0},        # A -> A2 (no second dim_c^2 buffer)
        compiler_params=pltpu.CompilerParams(
            dimension_semantics=("parallel",),
            vmem_limit_bytes=48 * 1024 * 1024),
        cost_estimate=pl.CostEstimate(
            flops=6 * dim_c * dim_c,
            transcendentals=dim_c * dim_c,
            bytes_accessed=(2 * dim_c * dim_c + Dl.size + Dt.size) * itemsize),
    )(mu, sigma, Dl, Dt, A)


def _reference(A, D, mu, sigma):
    mask = (D > 0).astype(A.dtype)
    G = jnp.exp(-(D - mu[0]) ** 2) / sigma[0] * mask
    dim_l, dim_p = D.shape
    A2 = A.at[-dim_l:, :dim_p].set(G)
    A2 = A2.at[:dim_p, -dim_l:].set(G.T)
    return A2


if __name__ == "__main__":
    key = jax.random.PRNGKey(0)

    def run_case(case_id, dim_l, dim_p):
        dim_c = dim_l + dim_p
        k_a, k_d, k_m = jax.random.split(jax.random.fold_in(key, case_id), 3)
        A = jax.random.uniform(k_a, (dim_c, dim_c), dtype=jnp.float32)
        # Distances in (0, 5], zeroed where "not connected".
        dist = jax.random.uniform(k_d, (dim_l, dim_p), dtype=jnp.float32) * 5.0
        conn = (jax.random.uniform(k_m, (dim_l, dim_p)) > 0.5).astype(jnp.float32)
        D = dist * conn
        # Parameters per nn.Module __init__ shapes (1,), non-trivial values.
        mu = jnp.array([0.3], dtype=jnp.float32)
        sigma = jnp.array([1.5], dtype=jnp.float32)

        ref = jax.block_until_ready(_reference(A, D, mu, sigma))
        # Donate A so XLA honours the kernel's input/output alias without a
        # defensive copy (A is never used again after this call).
        fwd = jax.jit(distance_aware_adjacency, donate_argnums=0)
        out = jax.block_until_ready(fwd(A, D, mu, sigma))

        assert out.shape == (dim_c, dim_c)
        assert jnp.allclose(out, ref, atol=1e-6, rtol=1e-6), (
            f"mismatch vs reference for dim_l={dim_l}, dim_p={dim_p}")

    run_case(0, 20, 28)   # row tile straddles the ligand/protein boundary
    run_case(1, 16, 32)   # block-aligned boundary
    print("KERNEL_OK")
</pallas_src>

<mosaic_0001>
module attributes {stable_mosaic.version = 11 : i64} {
  func.func @_adj_kernel(%arg0: i32, %arg1: memref<1xf32, #tpu.memory_space<smem>>, %arg2: memref<1xf32, #tpu.memory_space<smem>>, %arg3: memref<8x28xf32, #tpu.memory_space<vmem>>, %arg4: memref<8x20xf32, #tpu.memory_space<vmem>>, %arg5: memref<8x48xf32, #tpu.memory_space<vmem>>, %arg6: memref<8x48xf32, #tpu.memory_space<vmem>>) attributes {dimension_semantics = [#tpu.dimension_semantics<parallel>], iteration_bounds = array<i64: 6>, scalar_prefetch = 0 : i64, scratch_operands = 0 : i64, tpu.core_type = #tpu.core_type<tc>, window_params = [{transform_indices = @transform_0, window_bounds = array<i64: 1>}, {transform_indices = @transform_1, window_bounds = array<i64: 1>}, {transform_indices = @transform_2, window_bounds = array<i64: 8, 28>}, {transform_indices = @transform_3, window_bounds = array<i64: 8, 20>}, {transform_indices = @transform_4, window_bounds = array<i64: 8, 48>}, {transform_indices = @transform_5, window_bounds = array<i64: 8, 48>}]} {
    %c0 = arith.constant 0 : index
    %0 = memref.load %arg1[%c0] : memref<1xf32, #tpu.memory_space<smem>>
    %c0_0 = arith.constant 0 : index
    %1 = memref.load %arg2[%c0_0] : memref<1xf32, #tpu.memory_space<smem>>
    %cst = arith.constant 1.000000e+00 : f32
    %2 = arith.divf %cst, %1 : f32
    %c0_1 = arith.constant 0 : index
    %c0_2 = arith.constant 0 : index
    %3 = vector.load %arg3[%c0_1, %c0_2] : memref<8x28xf32, #tpu.memory_space<vmem>>, vector<8x28xf32>
    %cst_3 = arith.constant 0.000000e+00 : f32
    %4 = vector.broadcast %cst_3 : f32 to vector<8x28xf32>
    %5 = arith.cmpf ogt, %3, %4 : vector<8x28xf32>
    %6 = vector.broadcast %0 : f32 to vector<8x28xf32>
    %7 = arith.subf %3, %6 : vector<8x28xf32>
    %8 = arith.mulf %7, %7 : vector<8x28xf32>
    %cst_4 = arith.constant 0.000000e+00 : f32
    %9 = vector.broadcast %cst_4 : f32 to vector<8x28xf32>
    %10 = arith.subf %9, %8 : vector<8x28xf32>
    %11 = math.exp %10 : vector<8x28xf32>
    %12 = vector.broadcast %2 : f32 to vector<8x28xf32>
    %13 = arith.mulf %11, %12 : vector<8x28xf32>
    %cst_5 = arith.constant 0.000000e+00 : f32
    %14 = vector.broadcast %cst_5 : f32 to vector<8x28xf32>
    %15 = arith.select %5, %13, %14 : vector<8x28xi1>, vector<8x28xf32>
    %c0_6 = arith.constant 0 : index
    %c0_7 = arith.constant 0 : index
    %16 = vector.load %arg4[%c0_6, %c0_7] : memref<8x20xf32, #tpu.memory_space<vmem>>, vector<8x20xf32>
    %cst_8 = arith.constant 0.000000e+00 : f32
    %17 = vector.broadcast %cst_8 : f32 to vector<8x20xf32>
    %18 = arith.cmpf ogt, %16, %17 : vector<8x20xf32>
    %19 = vector.broadcast %0 : f32 to vector<8x20xf32>
    %20 = arith.subf %16, %19 : vector<8x20xf32>
    %21 = arith.mulf %20, %20 : vector<8x20xf32>
    %cst_9 = arith.constant 0.000000e+00 : f32
    %22 = vector.broadcast %cst_9 : f32 to vector<8x20xf32>
    %23 = arith.subf %22, %21 : vector<8x20xf32>
    %24 = math.exp %23 : vector<8x20xf32>
    %25 = vector.broadcast %2 : f32 to vector<8x20xf32>
    %26 = arith.mulf %24, %25 : vector<8x20xf32>
    %cst_10 = arith.constant 0.000000e+00 : f32
    %27 = vector.broadcast %cst_10 : f32 to vector<8x20xf32>
    %28 = arith.select %18, %26, %27 : vector<8x20xi1>, vector<8x20xf32>
    %c8_i32 = arith.constant 8 : i32
    %29 = arith.muli %arg0, %c8_i32 : i32
    %30 = tpu.iota {dimensions = array<i32: 0>} : vector<8x1xi32>
    %31 = vector.broadcast %29 : i32 to vector<8x1xi32>
    %32 = arith.addi %30, %31 : vector<8x1xi32>
    %c28_i32 = arith.constant 28 : i32
    %33 = vector.broadcast %c28_i32 : i32 to vector<8x1xi32>
    %34 = arith.cmpi sge, %32, %33 : vector<8x1xi32>
    %c0_11 = arith.constant 0 : index
    %c0_12 = arith.constant 0 : index
    %35 = vector.load %arg5[%c0_11, %c0_12] : memref<8x48xf32, #tpu.memory_space<vmem>>, vector<8x28xf32>
    %36 = vector.shape_cast %34 : vector<8x1xi1> to vector<8x1xi1>
    %37 = vector.broadcast %36 : vector<8x1xi1> to vector<8x28xi1>
    %38 = arith.select %37, %15, %35 : vector<8x28xi1>, vector<8x28xf32>
    %c0_13 = arith.constant 0 : index
    %c0_14 = arith.constant 0 : index
    %39 = vector.load %arg6[%c0_13, %c0_14] : memref<8x48xf32, #tpu.memory_space<vmem>>, vector<8x28xf32>
    tpu.vector_store %arg6[%c0_13, %c0_14], %38 {strides = array<i32>} : memref<8x48xf32, #tpu.memory_space<vmem>>, vector<8x28xf32>,
    %c0_15 = arith.constant 0 : index
    %c28 = arith.constant 28 : index
    %40 = vector.load %arg5[%c0_15, %c28] : memref<8x48xf32, #tpu.memory_space<vmem>>, vector<8x20xf32>
    %41 = vector.shape_cast %34 : vector<8x1xi1> to vector<8x1xi1>
    %42 = vector.broadcast %41 : vector<8x1xi1> to vector<8x20xi1>
    %43 = arith.select %42, %40, %28 : vector<8x20xi1>, vector<8x20xf32>
    %c0_16 = arith.constant 0 : index
    %c28_17 = arith.constant 28 : index
    %44 = vector.load %arg6[%c0_16, %c28_17] : memref<8x48xf32, #tpu.memory_space<vmem>>, vector<8x20xf32>
    tpu.vector_store %arg6[%c0_16, %c28_17], %43 {strides = array<i32>} : memref<8x48xf32, #tpu.memory_space<vmem>>, vector<8x20xf32>,
    return
  }
  func.func @transform_0(%arg0: i32) -> i32 {
    %c0_i32 = arith.constant 0 : i32
    %c0_i32_0 = arith.constant 0 : i32
    return %c0_i32 : i32
  }
  func.func @transform_1(%arg0: i32) -> i32 {
    %c0_i32 = arith.constant 0 : i32
    %c0_i32_0 = arith.constant 0 : i32
    return %c0_i32 : i32
  }
  func.func @transform_2(%arg0: i32) -> (i32, i32) {
    %c3_i32 = arith.constant 3 : i32
    %0 = arith.subi %arg0, %c3_i32 : i32
    %c0_i32 = arith.constant 0 : i32
    %1 = arith.maxsi %0, %c0_i32 : i32
    %c0_i32_0 = arith.constant 0 : i32
    %c0_i32_1 = arith.constant 0 : i32
    return %1, %c0_i32_0 : i32, i32
  }
  func.func @transform_3(%arg0: i32) -> (i32, i32) {
    %c3_i32 = arith.constant 3 : i32
    %0 = arith.minsi %arg0, %c3_i32 : i32
    %c0_i32 = arith.constant 0 : i32
    %c0_i32_0 = arith.constant 0 : i32
    return %0, %c0_i32 : i32, i32
  }
  func.func @transform_4(%arg0: i32) -> (i32, i32) {
    %c0_i32 = arith.constant 0 : i32
    %c0_i32_0 = arith.constant 0 : i32
    return %arg0, %c0_i32 : i32, i32
  }
  func.func @transform_5(%arg0: i32) -> (i32, i32) {
    %c0_i32 = arith.constant 0 : i32
    %c0_i32_0 = arith.constant 0 : i32
    return %arg0, %c0_i32 : i32, i32
  }
}

</mosaic_0001>

<llo_original>
// kernel: distance_aware_adjacency.1
$region0: #{distance_aware_adjacency.1}
  #allocation0 [shape = 'u32[]', space=smem, size = 0x4, offset = 0x4, fixed_abs, tag = 'smem constant byte address 0x4 - core index']
  #allocation1 [shape = 'u32[144,128]{1,0:T(1,128)}', space=vmem, size = 0x12000, scoped, tag = 'internal scratch']
  #allocation2 [shape = 'f32[1]{0:T(128)S(6)}', space=smem, size = 0x200, scoped, tag = 'scoped memory for distance_aware_adjacency.1']
  #allocation3 [shape = 'f32[1]{0:T(128)S(6)}', space=smem, size = 0x200, scoped, tag = 'scoped memory for distance_aware_adjacency.1']
  %s0 = inlined_call_operand.<no memory space> [shape: f32[1], index: 0, kind: input, shape index: {}]
  %s1 = inlined_call_operand.<no memory space> [shape: f32[1], index: 1, kind: input, shape index: {}]
  %s2 = inlined_call_operand.vmem [shape: f32[24,28], index: 2, kind: input, shape index: {}]
  %s3 = inlined_call_operand.vmem [shape: f32[32,20], index: 3, kind: input, shape index: {}]
  %s4 = inlined_call_operand.hbm [shape: f32[48,48], index: 4, kind: input, shape index: {}, may-alias: {4,5}]
  %s5 = inlined_call_operand.hbm [shape: f32[48,48], index: 5, kind: output, shape index: {}, may-alias: {4,5}]
  %s6 = sld [smem:[#allocation0]]
  $region57: #{distance_aware_adjacency.1} parent=0
    _
  %s8 = ssub.s32 1, %s6
  %s9 = scalar_select 0, %s8, %s6
  %10 = sst [smem:[#allocation2]] %s0
  %11 = sst [smem:[#allocation3]] %s1
  $region1: #{distance_aware_adjacency.1} parent=0
    #allocation4 [shape = 'u8[8192]{0}', space=vmem, size = 0x2000, scoped, tag = 'input window, operand 4']
    #allocation5 [shape = 's32[2]{0}', space=sflag, size = 0x8, scoped, tag = 'scoped memory for distance_aware_adjacency.1']
    #allocation6 [shape = 's32[2]{0}', space=sflag, size = 0x8, scoped, tag = 'scoped memory for distance_aware_adjacency.1']
    #allocation7 [shape = 'u8[8192]{0}', space=vmem, size = 0x2000, scoped, tag = 'output window, operand 0']
    %12 = vsyncpa [#allocation5], 0
    %s13 = scalar_lea.sflag [#allocation5], 1
    %14 = vsyncpa %s13, 0
    %15 = vsyncpa [#allocation6], 0
    %s16 = scalar_lea.sflag [#allocation6], 1
    %17 = vsyncpa %s16, 0
    loop: start=0, step=1, limit=8
    $region2: #{distance_aware_adjacency.1} parent=1 // loop_pre_header
      _
    $region3: #{distance_aware_adjacency.1} parent=1 // loop_header
      %s19 = sphi 0, %s23
      %p20 = scmp.ge.s32.totalorder %s19, 8
      %s27 = sphi 0, %s27
      %s29 = sphi 0, %s27
      %s30 = sphi 0, %s29
      %s44 = sphi 0, %s30
      %s48 = sphi 0, %s48
      %s50 = sphi 0, %s48
      %s51 = sphi 0, %s50
      %s65 = sphi 0, %s51
      %s77 = sphi 0, %s79
      %s80 = sphi 0, %s77
      %s81 = sphi 0, %s80
      %s97 = sphi 0, %s81
      %s107 = sphi 0, %s109
      %s110 = sphi 0, %s107
      %s111 = sphi 0, %s110
      %s127 = sphi 0, %s111
      %s133 = sphi 0, %s135
      %s136 = sphi 0, %s133
      %s137 = sphi 0, %s136
      %s153 = sphi 0, %s137
      %s159 = sphi 0, %s161
      %s162 = sphi 0, %s159
      %s163 = sphi 0, %s162
      %s179 = sphi 0, %s163
    $region4: #{distance_aware_adjacency.1} parent=1 // loop_header_branch
      %22 = sbr.rel (%p20) target = $region8
    $region5: #{distance_aware_adjacency.1} parent=1 // loop_body
      %s24 = ssub.s32 %s19, 1
      %s25 = ssub.s32 %s19, 2
      %s26 = sadd.s32 %s19, 1
      %s28 = sadd.s32 %s27, 1
      %p31 = scmp.eq.s32.totalorder %s19, 5
      %p32 = scmp.ne.s32.totalorder %s27, %s29
      %p33 = scmp.eq.s32.totalorder %s19, 0
      %p34 = por %p32, %p33
      %p35 = scmp.ne.s32.totalorder %s27, %s29
      %p36 = scmp.eq.s32.totalorder %s24, 5
      %p37 = por %p35, %p36
      %p38 = scmp.ne.s32.totalorder %s29, %s30
      %p39 = scmp.eq.s32.totalorder %s24, 0
      %p40 = por %p38, %p39
      %p41 = scmp.ne.s32.totalorder %s29, %s30
      %p42 = scmp.eq.s32.totalorder %s25, 5
      %p43 = por %p41, %p42
      %p45 = scmp.ne.s32.totalorder %s30, %s44
      %p46 = scmp.eq.s32.totalorder %s25, 0
      %p47 = por %p45, %p46
      %s49 = sadd.s32 %s48, 1
      %p52 = scmp.eq.s32.totalorder %s19, 5
      %p53 = scmp.ne.s32.totalorder %s48, %s50
      %p54 = scmp.eq.s32.totalorder %s19, 0
      %p55 = por %p53, %p54
      %p56 = scmp.ne.s32.totalorder %s48, %s50
      %p57 = scmp.eq.s32.totalorder %s24, 5
      %p58 = por %p56, %p57
      %p59 = scmp.ne.s32.totalorder %s50, %s51
      %p60 = scmp.eq.s32.totalorder %s24, 0
      %p61 = por %p59, %p60
      %p62 = scmp.ne.s32.totalorder %s50, %s51
      %p63 = scmp.eq.s32.totalorder %s25, 5
      %p64 = por %p62, %p63
      %p66 = scmp.ne.s32.totalorder %s51, %s65
      %p67 = scmp.eq.s32.totalorder %s25, 0
      %p68 = por %p66, %p67
      %s69 = ssub.s32 %s19, 3
      %p70 = scmp.gt.s32.totalorder %s69, 0
      %s71 = scalar_select %p70, %s69, 0
      %s72 = ssub.s32 %s26, 3
      %p73 = scmp.gt.s32.totalorder %s72, 0
      %s74 = scalar_select %p73, %s72, 0
      %s75 = ssub.s32 %s71, %s74
      %p76 = scmp.eq.s32.totalorder %s75, 0
      %s78 = sadd.s32 %s77, 1
      %s79 = scalar_select %p76, %s77, %s78
      %p82 = pneg %p76
      %p83 = scmp.eq.s32.totalorder %s19, 5
      %p84 = por %p82, %p83
      %p85 = scmp.ne.s32.totalorder %s77, %s80
      %p86 = scmp.eq.s32.totalorder %s19, 0
      %p87 = por %p85, %p86
      %p88 = scmp.ne.s32.totalorder %s77, %s80
      %p89 = scmp.eq.s32.totalorder %s24, 5
      %p90 = por %p88, %p89
      %p91 = scmp.ne.s32.totalorder %s80, %s81
      %p92 = scmp.eq.s32.totalorder %s24, 0
      %p93 = por %p91, %p92
      %p94 = scmp.ne.s32.totalorder %s80, %s81
      %p95 = scmp.eq.s32.totalorder %s25, 5
      %p96 = por %p94, %p95
      %p98 = scmp.ne.s32.totalorder %s81, %s97
      %p99 = scmp.eq.s32.totalorder %s25, 0
      %p100 = por %p98, %p99
      %p101 = scmp.lt.s32.totalorder %s19, 3
      %s102 = scalar_select %p101, %s19, 3
      %p103 = scmp.lt.s32.totalorder %s26, 3
      %s104 = scalar_select %p103, %s26, 3
      %s105 = ssub.s32 %s102, %s104
      %p106 = scmp.eq.s32.totalorder %s105, 0
      %s108 = sadd.s32 %s107, 1
      %s109 = scalar_select %p106, %s107, %s108
      %p112 = pneg %p106
      %p113 = scmp.eq.s32.totalorder %s19, 5
      %p114 = por %p112, %p113
      %p115 = scmp.ne.s32.totalorder %s107, %s110
      %p116 = scmp.eq.s32.totalorder %s19, 0
      %p117 = por %p115, %p116
      %p118 = scmp.ne.s32.totalorder %s107, %s110
      %p119 = scmp.eq.s32.totalorder %s24, 5
      %p120 = por %p118, %p119
      %p121 = scmp.ne.s32.totalorder %s110, %s111
      %p122 = scmp.eq.s32.totalorder %s24, 0
      %p123 = por %p121, %p122
      %p124 = scmp.ne.s32.totalorder %s110, %s111
      %p125 = scmp.eq.s32.totalorder %s25, 5
      %p126 = por %p124, %p125
      %p128 = scmp.ne.s32.totalorder %s111, %s127
      %p129 = scmp.eq.s32.totalorder %s25, 0
      %p130 = por %p128, %p129
      %s131 = ssub.s32 %s19, %s26
      %p132 = scmp.eq.s32.totalorder %s131, 0
      %s134 = sadd.s32 %s133, 1
      %s135 = scalar_select %p132, %s133, %s134
      %p138 = pneg %p132
      %p139 = scmp.eq.s32.totalorder %s19, 5
      %p140 = por %p138, %p139
      %p141 = scmp.ne.s32.totalorder %s133, %s136
      %p142 = scmp.eq.s32.totalorder %s19, 0
      %p143 = por %p141, %p142
      %p144 = scmp.ne.s32.totalorder %s133, %s136
      %p145 = scmp.eq.s32.totalorder %s24, 5
      %p146 = por %p144, %p145
      %p147 = scmp.ne.s32.totalorder %s136, %s137
      %p148 = scmp.eq.s32.totalorder %s24, 0
      %p149 = por %p147, %p148
      %p150 = scmp.ne.s32.totalorder %s136, %s137
      %p151 = scmp.eq.s32.totalorder %s25, 5
      %p152 = por %p150, %p151
      %p154 = scmp.ne.s32.totalorder %s137, %s153
      %p155 = scmp.eq.s32.totalorder %s25, 0
      %p156 = por %p154, %p155
      %s157 = ssub.s32 %s19, %s26
      %p158 = scmp.eq.s32.totalorder %s157, 0
      %s160 = sadd.s32 %s159, 1
      %s161 = scalar_select %p158, %s159, %s160
      %p164 = pneg %p158
      %p165 = scmp.eq.s32.totalorder %s19, 5
      %p166 = por %p164, %p165
      %p167 = scmp.ne.s32.totalorder %s159, %s162
      %p168 = scmp.eq.s32.totalorder %s19, 0
      %p169 = por %p167, %p168
      %p170 = scmp.ne.s32.totalorder %s159, %s162
      %p171 = scmp.eq.s32.totalorder %s24, 5
      %p172 = por %p170, %p171
      %p173 = scmp.ne.s32.totalorder %s162, %s163
      %p174 = scmp.eq.s32.totalorder %s24, 0
      %p175 = por %p173, %p174
      %p176 = scmp.ne.s32.totalorder %s162, %s163
      %p177 = scmp.eq.s32.totalorder %s25, 5
      %p178 = por %p176, %p177
      %p180 = scmp.ne.s32.totalorder %s163, %s179
      %p181 = scmp.eq.s32.totalorder %s25, 0
      %p182 = por %p180, %p181
      %p183 = scmp.le.s32.totalorder 1, %s19
      %p184 = scmp.lt.s32.totalorder %s19, 7
      %p185 = pnand %p183, %p184
      %p186 = pneg %p185
      // Predicated region
      $region9: #{distance_aware_adjacency.1} parent=5 // pred_check
        _
      $region10: #{distance_aware_adjacency.1} parent=5 // pred_check_branch
        %188 = sbr.rel (%p185) target = $region12
      $region11: #{distance_aware_adjacency.1} parent=5 // pred_region
        %s189 = ssub.s32 %s19, 1
        // Predicated region
        $region13: #{distance_aware_adjacency.1} parent=11 // pred_check
          %p190 = pneg %p40
        $region14: #{distance_aware_adjacency.1} parent=11 // pred_check_branch
          %192 = sbr.rel (%p190) target = $region16
        $region15: #{distance_aware_adjacency.1} parent=11 // pred_region
          _
        $region16: #{distance_aware_adjacency.1} parent=11 // pred_fallthru
          _
        // Predicated region
        $region17: #{distance_aware_adjacency.1} parent=11 // pred_check
          %p193 = pneg %p61
        $region18: #{distance_aware_adjacency.1} parent=11 // pred_check_branch
          %195 = sbr.rel (%p193) target = $region20
        $region19: #{distance_aware_adjacency.1} parent=11 // pred_region
          _
        $region20: #{distance_aware_adjacency.1} parent=11 // pred_fallthru
          _
      $region12: #{distance_aware_adjacency.1} parent=5 // pred_fallthru
        _
      %p196 = scmp.lt.s32.totalorder %s19, 6
      // Predicated region
      $region21: #{distance_aware_adjacency.1} parent=5 // pred_check
        %p197 = pneg %p196
      $region22: #{distance_aware_adjacency.1} parent=5 // pred_check_branch
        %199 = sbr.rel (%p197) target = $region24
      $region23: #{distance_aware_adjacency.1} parent=5 // pred_region
        // Predicated region
        $region25: #{distance_aware_adjacency.1} parent=23 // pred_check
          %p200 = pneg %p87
        $region26: #{distance_aware_adjacency.1} parent=23 // pred_check_branch
          %202 = sbr.rel (%p200) target = $region28
        $region27: #{distance_aware_adjacency.1} parent=23 // pred_region
          %s203 = ssub.s32 %s19, 3
          %p204 = scmp.gt.s32.totalorder %s203, 0
          %s205 = scalar_select %p204, %s203, 0
          %p206 = scmp.lt.s32.totalorder %s205, 2
          %s207 = scalar_select %p206, %s205, 2
          %s208 = smul.addr %s207, 8
          %s209 = scalar_lea.vmem %s2, %s208
          %s210 = ssub.s32 %s19, 3
          %p211 = scmp.gt.s32.totalorder %s210, 0
          %s212 = scalar_select %p211, %s210, 0
        $region28: #{distance_aware_adjacency.1} parent=23 // pred_fallthru
          _
        // Predicated region
        $region29: #{distance_aware_adjacency.1} parent=23 // pred_check
          %p213 = pneg %p117
        $region30: #{distance_aware_adjacency.1} parent=23 // pred_check_branch
          %215 = sbr.rel (%p213) target = $region32
        $region31: #{distance_aware_adjacency.1} parent=23 // pred_region
          %p216 = scmp.lt.s32.totalorder %s19, 3
          %s217 = scalar_select %p216, %s19, 3
          %p218 = scmp.lt.s32.totalorder %s217, 3
          %s219 = scalar_select %p218, %s217, 3
          %s220 = smul.addr %s219, 8
          %s221 = scalar_lea.vmem %s3, %s220
          %p222 = scmp.lt.s32.totalorder %s19, 3
          %s223 = scalar_select %p222, %s19, 3
        $region32: #{distance_aware_adjacency.1} parent=23 // pred_fallthru
          _
        // Predicated region
        $region33: #{distance_aware_adjacency.1} parent=23 // pred_check
          %p224 = pneg %p143
        $region34: #{distance_aware_adjacency.1} parent=23 // pred_check_branch
          %226 = sbr.rel (%p224) target = $region36
        $region35: #{distance_aware_adjacency.1} parent=23 // pred_region
          %s227 = sand.u32 %s133, 1
          %s228 = scalar_lea.sflag [#allocation5], %s227
          %s229 = sand.u32 %s133, 1
          %s230 = smul.addr %s229, 8
          %s231 = scalar_lea.vmem [#allocation4], %s230
          %s233 = ssub.s32 128, 128
          %234 = vsyncadd %s228, %s233
          %s235 = smul.addr %s19, 128
          %s236 = scalar_lea.hbm %s4, %s235
          %s238 = sshll.u32 %s231, 4
          %s239 = int_to_ptr.vmem [resolvable:$true] %s238
          %241 = dma.hbm_to_vmem [thread:$0]  %s236, 128, %s239, %s228
        $region36: #{distance_aware_adjacency.1} parent=23 // pred_fallthru
          _
      $region24: #{distance_aware_adjacency.1} parent=5 // pred_fallthru
        _
      %p242 = scmp.le.s32.totalorder 1, %s19
      %p243 = scmp.lt.s32.totalorder %s19, 7
      %p244 = pnand %p242, %p243
      %p245 = pneg %p244
      // Predicated region
      $region37: #{distance_aware_adjacency.1} parent=5 // pred_check
        _
      $region38: #{distance_aware_adjacency.1} parent=5 // pred_check_branch
        %247 = sbr.rel (%p244) target = $region40
      $region39: #{distance_aware_adjacency.1} parent=5 // pred_region
        %s248 = ssub.s32 %s19, 1
        %s249 = sand.u32 %s136, 1
        %s250 = scalar_lea.sflag [#allocation5], %s249
        %s251 = sand.u32 %s136, 1
        %s252 = smul.addr %s251, 8
        %s253 = scalar_lea.vmem [#allocation4], %s252
        // Predicated region
        $region41: #{distance_aware_adjacency.1} parent=39 // pred_check
          %p254 = pneg %p149
        $region42: #{distance_aware_adjacency.1} parent=39 // pred_check_branch
          %256 = sbr.rel (%p254) target = $region44
        $region43: #{distance_aware_adjacency.1} parent=39 // pred_region
          %257 = dma.done %s250, 128
        $region44: #{distance_aware_adjacency.1} parent=39 // pred_fallthru
          _
        %p258 = pneg %p40
        %p259 = pneg %p37
        %p260 = pneg %p61
        %p261 = pneg %p58
        %s262 = ssub.s32 %s24, 3
        %p263 = scmp.gt.s32.totalorder %s262, 0
        %s264 = scalar_select %p263, %s262, 0
        %p265 = scmp.lt.s32.totalorder %s264, 2
        %s266 = scalar_select %p265, %s264, 2
        %s267 = smul.addr %s266, 8
        %s268 = scalar_lea.vmem %s2, %s267
        %p269 = pneg %p93
        %p270 = pneg %p90
        %p271 = scmp.lt.s32.totalorder %s24, 3
        %s272 = scalar_select %p271, %s24, 3
        %p273 = scmp.lt.s32.totalorder %s272, 3
        %s274 = scalar_select %p273, %s272, 3
        %s275 = smul.addr %s274, 8
        %s276 = scalar_lea.vmem %s3, %s275
        %p277 = pneg %p123
        %p278 = pneg %p120
        %s279 = sand.u32 %s136, 1
        %s280 = scalar_lea.sflag [#allocation5], %s279
        %s281 = sand.u32 %s136, 1
        %s282 = smul.addr %s281, 8
        %s283 = scalar_lea.vmem [#allocation4], %s282
        %p284 = pneg %p149
        %p285 = pneg %p146
        %p286 = pneg %p175
        %p287 = pneg %p172
        %s288 = sand.u32 %s162, 1
        %s289 = scalar_lea.sflag [#allocation6], %s288
        %s290 = sand.u32 %s162, 1
        %s291 = smul.addr %s290, 8
        %s292 = scalar_lea.vmem [#allocation7], %s291
        %s293 = ssub.s32 %s24, 3
        %p294 = scmp.gt.s32.totalorder %s293, 0
        %s295 = scalar_select %p294, %s293, 0
        %p296 = scmp.lt.s32.totalorder %s295, 2
        %s297 = scalar_select %p296, %s295, 2
        %s298 = smul.addr %s297, 8
        %s299 = scalar_lea.vmem %s2, %s298
        %s300 = ssub.s32 %s24, 3
        %p301 = scmp.gt.s32.totalorder %s300, 0
        %s302 = scalar_select %p301, %s300, 0
        %p303 = scmp.lt.s32.totalorder %s24, 3
        %s304 = scalar_select %p303, %s24, 3
        %p305 = scmp.lt.s32.totalorder %s304, 3
        %s306 = scalar_select %p305, %s304, 3
        %s307 = smul.addr %s306, 8
        %s308 = scalar_lea.vmem %s3, %s307
        %p309 = scmp.lt.s32.totalorder %s24, 3
        %s310 = scalar_select %p309, %s24, 3
        %s311 = sld [smem:[#allocation2]]
        %s312 = sld [smem:[#allocation3]]
        %v313 = vstv %s312
        %v314 = vrcp.pop %v313
        %s315 = vtos %v314
        %v316 = vld [vmem:[%s299] sm:$0xff]
        %vm317 = vcmp.gt.f32.partialorder %v316, 0.0
        %v318 = vstv %s311
        %v319 = vsub.f32 %v316, %v318
        %v320 = vmul.f32 %v319, %v319
        %v321 = vsub.f32 0.0, %v320
        %v322 = vmul.f32 %v321, 1.442695
        %v323 = vpow.pop %v322
        %v324 = vstv %s315
        %v325 = vmul.f32 %v323, %v324
        %v326 = vsel %vm317, %v325, 0.0
        %v327 = vld [vmem:[%s308] sm:$0xff]
        %vm328 = vcmp.gt.f32.partialorder %v327, 0.0
        %v329 = vsub.f32 %v327, %v318
        %v330 = vmul.f32 %v329, %v329
        %v331 = vsub.f32 0.0, %v330
        %v332 = vmul.f32 %v331, 1.442695
        %v333 = vpow.pop %v332
        %v334 = vmul.f32 %v333, %v324
        %v335 = vsel %vm328, %v334, 0.0
        %s336 = smul.u32 %s24, 8
        %v337 = vlaneseq
        %v338 = vshrl.u32 %v337, 7
        %v339 = vstv %s336
        %v340 = vadd.s32 %v338, %v339
        %vm341 = vcmp.ge.s32.totalorder %v340, 28
        %v342 = vld [vmem:[%s253] sm:$0xff]
        %v343 = vsel %vm341, 1, 0
        %vm344 = vcmp.eq.s32.totalorder %v343, 1
        %v345 = vsel %vm344, %v326, %v342
        %vm346 = vcmask 228352
        %347 = vst.msk [vmem:[%s292] sm:$0xff] %vm346, %v345
        %v348 = vld [vmem:[%s253] sm:$0xff]
        %350 = vrot.lane.b32.xlu0 %v335, 28
        %v351 = vpop.permute.xlu0 %350
        %v353 = vsel %vm344, %v348, %v351
        %vm354 = vcmask 392416
        %355 = vst.msk [vmem:[%s292] sm:$0xff] %vm354, %v353
        %s356 = sand.u32 %s162, 1
        %s357 = scalar_lea.sflag [#allocation6], %s356
        %s358 = sand.u32 %s162, 1
        %s359 = smul.addr %s358, 8
        %s360 = scalar_lea.vmem [#allocation7], %s359
        // Predicated region
        $region45: #{distance_aware_adjacency.1} parent=39 // pred_check
          %p361 = pneg %p172
        $region46: #{distance_aware_adjacency.1} parent=39 // pred_check_branch
          %363 = sbr.rel (%p361) target = $region48
        $region47: #{distance_aware_adjacency.1} parent=39 // pred_region
          %s365 = ssub.s32 128, 128
          %366 = vsyncadd %s357, %s365
          %s367 = smul.addr %s24, 128
          %s368 = scalar_lea.hbm %s5, %s367
          %s370 = sshll.u32 %s360, 4
          %s371 = int_to_ptr.vmem [resolvable:$true] %s370
          %373 = dma.vmem_to_hbm [thread:$0]  %s371, 128, %s368, %s357
        $region48: #{distance_aware_adjacency.1} parent=39 // pred_fallthru
          _
      $region40: #{distance_aware_adjacency.1} parent=5 // pred_fallthru
        _
      %p374 = scmp.le.s32.totalorder 2, %s19
      // Predicated region
      $region49: #{distance_aware_adjacency.1} parent=5 // pred_check
        %p375 = pneg %p374
      $region50: #{distance_aware_adjacency.1} parent=5 // pred_check_branch
        %377 = sbr.rel (%p375) target = $region52
      $region51: #{distance_aware_adjacency.1} parent=5 // pred_region
        %s378 = ssub.s32 %s19, 2
        // Predicated region
        $region53: #{distance_aware_adjacency.1} parent=51 // pred_check
          %p379 = pneg %p178
        $region54: #{distance_aware_adjacency.1} parent=51 // pred_check_branch
          %381 = sbr.rel (%p379) target = $region56
        $region55: #{distance_aware_adjacency.1} parent=51 // pred_region
          %s382 = sand.u32 %s163, 1
          %s383 = scalar_lea.sflag [#allocation6], %s382
          %s384 = sand.u32 %s163, 1
          %s385 = smul.addr %s384, 8
          %s386 = scalar_lea.vmem [#allocation7], %s385
          %387 = dma.done %s383, 128
        $region56: #{distance_aware_adjacency.1} parent=51 // pred_fallthru
          _
      $region52: #{distance_aware_adjacency.1} parent=5 // pred_fallthru
        _
    $region6: #{distance_aware_adjacency.1} parent=1 // loop_footer
      %s23 = sadd.s32 1, %s19
    $region7: #{distance_aware_adjacency.1} parent=1 // loop_footer_branch
      %18 = sbr.rel target = $region3
    $region8: #{distance_aware_adjacency.1} parent=1 // loop_exit
      _
    %388 = vsyncpa [#allocation5], 1
    %s389 = scalar_lea.sflag [#allocation5], 1
    %390 = vsyncpa %s389, 1
    %391 = vsyncpa [#allocation6], 1
    %s392 = scalar_lea.sflag [#allocation6], 1
    %393 = vsyncpa %s392, 1

</llo_original>
